<compile_context>
chip_gen: v5e
topology: v5e:2x2
jax: 0.10.0
libtpu: 0.0.40
codegen_flags: <defaults>
</compile_context>

<pallas_src>
import functools

import jax
import jax.numpy as jnp
from jax.experimental import pallas as pl
from jax.experimental.pallas import tpu as pltpu

_BN_EPS = 1e-5


def _round_up(x, m):
    return ((x + m - 1) // m) * m


def _pad_tile(n, unit, max_tile):
    """Return (padded_extent, tile) with tile | padded_extent, unit | tile."""
    base = _round_up(max(n, 1), unit)
    tile = min(max_tile, base)
    padded = _round_up(base, tile)
    return padded, tile


# ----------------------------- Pallas kernels (hot path) -----------------------------

def _conv_kernel(p_ref, w_ref, b_ref, o_ref, acc_ref, *, inner_relu):
    """One (TM, TN) output tile: accumulate over K grid axis, fused epilogue."""
    kk = pl.program_id(2)

    @pl.when(kk == 0)
    def _():
        acc_ref[...] = jnp.zeros_like(acc_ref)

    acc_ref[...] += jnp.dot(p_ref[...], w_ref[...],
                            preferred_element_type=jnp.float32)

    @pl.when(kk == pl.num_programs(2) - 1)
    def _():
        y = acc_ref[...] + b_ref[0:1, :]          # shift (BN beta + folded bias)
        if inner_relu:
            y = jnp.maximum(y, 0.0)
        o_ref[...] = y.astype(o_ref.dtype)


def _conv_res_kernel(p_ref, w_ref, b_ref, r_ref, o_ref, acc_ref, *, inner_relu):
    """Same as _conv_kernel plus FastBlock residual add + outer ReLU."""
    kk = pl.program_id(2)

    @pl.when(kk == 0)
    def _():
        acc_ref[...] = jnp.zeros_like(acc_ref)

    acc_ref[...] += jnp.dot(p_ref[...], w_ref[...],
                            preferred_element_type=jnp.float32)

    @pl.when(kk == pl.num_programs(2) - 1)
    def _():
        y = acc_ref[...] + b_ref[0:1, :]
        if inner_relu:
            y = jnp.maximum(y, 0.0)
        y = y + r_ref[...]
        o_ref[...] = jnp.maximum(y, 0.0).astype(o_ref.dtype)   # outer ReLU


def _maxpool_kernel(w_ref, o_ref):
    # w: (9, TM, TC) -> o: (TM, TC); pairwise reduction tree (shorter dep chain).
    vals = [w_ref[t] for t in range(w_ref.shape[0])]
    while len(vals) > 1:
        nxt = [jnp.maximum(vals[i], vals[i + 1]) for i in range(0, len(vals) - 1, 2)]
        if len(vals) % 2:
            nxt.append(vals[-1])
        vals = nxt
    o_ref[...] = vals[0]


# ----------------------------- glue: im2col + pallas_call -----------------------------

def _im2col(x, k, stride, pad):
    """x: NHWC float32 -> (patches (M, k*k*C), Ho, Wo)."""
    B, H, W, C = x.shape
    if k == 1 and pad == 0:
        xs = x[:, ::stride, ::stride, :]
        Ho, Wo = xs.shape[1], xs.shape[2]
        return xs.reshape(B * Ho * Wo, C), Ho, Wo
    xp = jnp.pad(x, ((0, 0), (pad, pad), (pad, pad), (0, 0)))
    Hp, Wp = H + 2 * pad, W + 2 * pad
    Ho = (Hp - k) // stride + 1
    Wo = (Wp - k) // stride + 1
    taps = []
    for i in range(k):
        for j in range(k):
            taps.append(xp[:, i:i + stride * Ho:stride, j:j + stride * Wo:stride, :])
    p = jnp.stack(taps, axis=3)  # (B, Ho, Wo, k*k, C)
    return p.reshape(B * Ho * Wo, k * k * C), Ho, Wo


def fused_conv(x, p, stride, pad, *, inner_relu, residual=None):
    """conv (tiled im2col matmul, bf16 operands) + shift [+ ReLU] [+ res + ReLU]."""
    B = x.shape[0]
    k, cout = p["k"], p["cout"]
    patches, Ho, Wo = _im2col(x, k, stride, pad)
    M, K = patches.shape

    Mp, TM = _pad_tile(M, 16, 512)        # M unit 16: bf16 sublane packing
    Kp, TK = _pad_tile(K, 128, 512)
    Np, TN = _pad_tile(cout, 128, 256)
    gm, gn, gk = Mp // TM, Np // TN, Kp // TK

    pmat = jnp.pad(patches.astype(jnp.bfloat16), ((0, Mp - M), (0, Kp - K)))
    wmat = jnp.pad(p["w"], ((0, Kp - K), (0, Np - cout)))           # bf16, scale-folded
    shift = jnp.pad(p["shift"], (0, Np - cout)).reshape(1, Np)
    shift = jnp.broadcast_to(shift, (8, Np)).astype(jnp.float32)    # lane-dense slab

    args = [pmat, wmat, shift]
    in_specs = [
        pl.BlockSpec((TM, TK), lambda i, j, kk: (i, kk)),
        pl.BlockSpec((TK, TN), lambda i, j, kk: (kk, j)),
        pl.BlockSpec((8, TN), lambda i, j, kk: (0, j)),
    ]

    if residual is None:
        kernel = functools.partial(_conv_kernel, inner_relu=inner_relu)
    else:
        r = residual.reshape(B * Ho * Wo, cout).astype(jnp.float32)
        r = jnp.pad(r, ((0, Mp - M), (0, Np - cout)))
        args.append(r)
        # index_map ignores kk -> DMA'd once per output tile, used in epilogue only.
        in_specs.append(pl.BlockSpec((TM, TN), lambda i, j, kk: (i, j)))
        kernel = functools.partial(_conv_res_kernel, inner_relu=inner_relu)

    out = pl.pallas_call(
        kernel,
        out_shape=jax.ShapeDtypeStruct((Mp, Np), jnp.float32),
        grid=(gm, gn, gk),
        in_specs=in_specs,
        out_specs=pl.BlockSpec((TM, TN), lambda i, j, kk: (i, j)),
        scratch_shapes=[pltpu.VMEM((TM, TN), jnp.float32)],
        compiler_params=pltpu.CompilerParams(
            dimension_semantics=("parallel", "parallel", "arbitrary")),
    )(*args)
    return out[:M, :cout].reshape(B, Ho, Wo, cout)


def maxpool_3x3_s2_p1(x):
    """nn.MaxPool2d(3, 2, 1) on NHWC via a tiled Pallas max-reduce kernel."""
    B, H, W, C = x.shape
    k, stride, pad = 3, 2, 1
    xp = jnp.pad(x, ((0, 0), (pad, pad), (pad, pad), (0, 0)),
                 constant_values=-jnp.inf)
    Hp, Wp = H + 2 * pad, W + 2 * pad
    Ho = (Hp - k) // stride + 1
    Wo = (Wp - k) // stride + 1
    M = B * Ho * Wo
    taps = []
    for i in range(k):
        for j in range(k):
            taps.append(
                xp[:, i:i + stride * Ho:stride, j:j + stride * Wo:stride, :]
                .reshape(M, C))
    stacked = jnp.stack(taps, axis=0)  # (9, M, C)

    Mp, TM = _pad_tile(M, 8, 512)
    Cp, TC = _pad_tile(C, 128, 256)
    stacked = jnp.pad(stacked, ((0, 0), (0, Mp - M), (0, Cp - C)),
                      constant_values=-jnp.inf)

    out = pl.pallas_call(
        _maxpool_kernel,
        out_shape=jax.ShapeDtypeStruct((Mp, Cp), jnp.float32),
        grid=(Mp // TM, Cp // TC),
        in_specs=[pl.BlockSpec((k * k, TM, TC), lambda i, j: (0, i, j))],
        out_specs=pl.BlockSpec((TM, TC), lambda i, j: (i, j)),
        compiler_params=pltpu.CompilerParams(
            dimension_semantics=("parallel", "parallel")),
    )(stacked)
    return out[:M, :C].reshape(B, Ho, Wo, C)


# ----------------------------- parameter init (deterministic) -----------------------------

def _init_pconv(key, cin, cout, k):
    """PartialConv2d: conv(k,k,bias) + BN(eval) + ReLU -> BN scale folded into w."""
    kw, kb = jax.random.split(key)
    w = jax.random.normal(kw, (k, k, cin, cout), jnp.float32) * 0.05
    b = jax.random.normal(kb, (cout,), jnp.float32) * 0.05
    # BN eval defaults: gamma=1, beta=0, mean=0, var=1 -> scale = 1/sqrt(1+eps)
    scale = 1.0 / jnp.sqrt(1.0 + _BN_EPS)
    w_folded = (w * scale).reshape(k * k * cin, cout).astype(jnp.bfloat16)
    shift = (scale * b).astype(jnp.float32)     # scale*(bias - mean) + beta
    return {"w": w_folded, "shift": shift, "k": k, "cout": cout}


def _init_shortcut(key, cin, cout):
    """1x1 conv (no bias) + BN(eval), no ReLU."""
    w = jax.random.normal(key, (1, 1, cin, cout), jnp.float32) * 0.05
    scale = 1.0 / jnp.sqrt(1.0 + _BN_EPS)
    w_folded = (w * scale).reshape(cin, cout).astype(jnp.bfloat16)
    return {"w": w_folded, "shift": jnp.zeros((cout,), jnp.float32),
            "k": 1, "cout": cout}


def _init_fpn(key, c):
    """Plain 1x1 conv with bias (no BN, no activation)."""
    kw, kb = jax.random.split(key)
    w = jax.random.normal(kw, (1, 1, c, c), jnp.float32) * 0.05
    b = jax.random.normal(kb, (c,), jnp.float32) * 0.05
    return {"w": w.reshape(c, c).astype(jnp.bfloat16),
            "shift": b.astype(jnp.float32), "k": 1, "cout": c}


def init_encoder(key, in_channels, channels):
    keys = list(jax.random.split(key, 64))
    kit = iter(keys)

    def init_block(cin, cout, stride):
        blk = {"conv1": _init_pconv(next(kit), cin, cout, 3),
               "conv2": _init_pconv(next(kit), cout, cout, 3),
               "shortcut": None}
        if stride != 1 or cin != cout:
            blk["shortcut"] = _init_shortcut(next(kit), cin, cout)
        return blk

    def init_stage(cin, cout, num_blocks=2):
        blocks = [init_block(cin, cout, 2)]
        for _ in range(num_blocks - 1):
            blocks.append(init_block(cout, cout, 1))
        return blocks

    params = {"stem": _init_pconv(next(kit), in_channels, channels[0], 7),
              "stage1": init_stage(channels[0], channels[0]),
              "stage2": init_stage(channels[0], channels[1]),
              "stage3": init_stage(channels[1], channels[2]),
              "stage4": init_stage(channels[2], channels[3]),
              "fpn": [_init_fpn(next(kit), c) for c in channels]}
    return params


# ----------------------------- forward pass -----------------------------

def _run_block(x, blk, stride):
    if blk["shortcut"] is None:
        residual = x
    else:
        residual = fused_conv(x, blk["shortcut"], stride=stride, pad=0,
                              inner_relu=False)
    h = fused_conv(x, blk["conv1"], stride=stride, pad=1, inner_relu=True)
    return fused_conv(h, blk["conv2"], stride=1, pad=1, inner_relu=True,
                      residual=residual)


def _run_stage(x, stage):
    x = _run_block(x, stage[0], 2)
    for blk in stage[1:]:
        x = _run_block(x, blk, 1)
    return x


def encoder_forward(params, x_nchw):
    x = jnp.transpose(x_nchw, (0, 2, 3, 1)).astype(jnp.float32)  # -> NHWC
    x = fused_conv(x, params["stem"], stride=2, pad=3, inner_relu=True)
    x = maxpool_3x3_s2_p1(x)                                     # x1
    x2 = _run_stage(x, params["stage1"])
    x3 = _run_stage(x2, params["stage2"])
    x4 = _run_stage(x3, params["stage3"])
    x5 = _run_stage(x4, params["stage4"])
    feats = []
    for fpn_p, xi in zip(params["fpn"], (x2, x3, x4, x5)):
        y = fused_conv(xi, fpn_p, stride=1, pad=0, inner_relu=False)
        feats.append(jnp.transpose(y, (0, 3, 1, 2)))  # back to NCHW
    return feats


# ----------------------------- main -----------------------------

if __name__ == "__main__":
    key = jax.random.PRNGKey(0)
    k_params, k_input = jax.random.split(key)

    in_channels = 4
    channels = [8, 16, 32, 64]      # small stand-in for [64, 128, 256, 512]
    x = jax.random.normal(k_input, (2, in_channels, 16, 16), jnp.float32)  # NCHW

    params = init_encoder(k_params, in_channels, channels)
    feats = encoder_forward(params, x)
    for f in feats:
        jax.block_until_ready(f)

    assert [tuple(f.shape) for f in feats] == [
        (2, channels[0], 2, 2),
        (2, channels[1], 1, 1),
        (2, channels[2], 1, 1),
        (2, channels[3], 1, 1),
    ]
    assert all(bool(jnp.all(jnp.isfinite(f))) for f in feats)
    print("KERNEL_OK")
</pallas_src>

<mosaic_0001>
module attributes {stable_mosaic.version = 11 : i64} {
  func.func @_conv_kernel(%arg0: i32, %arg1: i32, %arg2: i32, %arg3: memref<128x256xbf16, #tpu.memory_space<vmem>>, %arg4: memref<256x128xbf16, #tpu.memory_space<vmem>>, %arg5: memref<8x128xf32, #tpu.memory_space<vmem>>, %arg6: memref<128x128xf32, #tpu.memory_space<vmem>>, %arg7: memref<128x128xf32, #tpu.memory_space<vmem>>) attributes {dimension_semantics = [#tpu.dimension_semantics<parallel>, #tpu.dimension_semantics<parallel>, #tpu.dimension_semantics<arbitrary>], iteration_bounds = array<i64: 1, 1, 1>, scalar_prefetch = 0 : i64, scratch_operands = 1 : i64, tpu.core_type = #tpu.core_type<tc>, window_params = [{transform_indices = @transform_0, window_bounds = array<i64: 128, 256>}, {transform_indices = @transform_1, window_bounds = array<i64: 256, 128>}, {transform_indices = @transform_2, window_bounds = array<i64: 8, 128>}, {transform_indices = @transform_3, window_bounds = array<i64: 128, 128>}]} {
    %c0_i32 = arith.constant 0 : i32
    %0 = arith.cmpi eq, %arg2, %c0_i32 : i32
    %1 = arith.extui %0 : i1 to i32
    %c0_i32_0 = arith.constant 0 : i32
    %2 = arith.cmpi ne, %1, %c0_i32_0 : i32
    scf.if %2 {
      %cst_10 = arith.constant 0.000000e+00 : f32
      %12 = vector.broadcast %cst_10 : f32 to vector<128x128xf32>
      %c0_11 = arith.constant 0 : index
      %c0_12 = arith.constant 0 : index
      %13 = vector.load %arg7[%c0_11, %c0_12] : memref<128x128xf32, #tpu.memory_space<vmem>>, vector<128x128xf32>
      tpu.vector_store %arg7[%c0_11, %c0_12], %12 {strides = array<i32>} : memref<128x128xf32, #tpu.memory_space<vmem>>, vector<128x128xf32>,
    } else {
    }
    %c0 = arith.constant 0 : index
    %c0_1 = arith.constant 0 : index
    %3 = vector.load %arg7[%c0, %c0_1] : memref<128x128xf32, #tpu.memory_space<vmem>>, vector<128x128xf32>
    %c0_2 = arith.constant 0 : index
    %c0_3 = arith.constant 0 : index
    %4 = vector.load %arg3[%c0_2, %c0_3] : memref<128x256xbf16, #tpu.memory_space<vmem>>, vector<128x256xbf16>
    %c0_4 = arith.constant 0 : index
    %c0_5 = arith.constant 0 : index
    %5 = vector.load %arg4[%c0_4, %c0_5] : memref<256x128xbf16, #tpu.memory_space<vmem>>, vector<256x128xbf16>
    %cst = arith.constant dense<0.000000e+00> : vector<128x128xf32>
    %6 = tpu.matmul %4, %5, %cst {dimension_numbers = #tpu.dot_dimension_numbers<[1], [0], [0], [1], [0, 0, 1, 1], [], []>} : vector<128x256xbf16>, vector<256x128xbf16>, vector<128x128xf32> -> vector<128x128xf32>
    %7 = arith.addf %3, %6 : vector<128x128xf32>
    %c0_6 = arith.constant 0 : index
    %c0_7 = arith.constant 0 : index
    %8 = vector.load %arg7[%c0_6, %c0_7] : memref<128x128xf32, #tpu.memory_space<vmem>>, vector<128x128xf32>
    tpu.vector_store %arg7[%c0_6, %c0_7], %7 {strides = array<i32>} : memref<128x128xf32, #tpu.memory_space<vmem>>, vector<128x128xf32>,
    %c0_i32_8 = arith.constant 0 : i32
    %9 = arith.cmpi eq, %arg2, %c0_i32_8 : i32
    %10 = arith.extui %9 : i1 to i32
    %c0_i32_9 = arith.constant 0 : i32
    %11 = arith.cmpi ne, %10, %c0_i32_9 : i32
    scf.if %11 {
      %c0_10 = arith.constant 0 : index
      %c0_11 = arith.constant 0 : index
      %12 = vector.load %arg7[%c0_10, %c0_11] : memref<128x128xf32, #tpu.memory_space<vmem>>, vector<128x128xf32>
      %c0_12 = arith.constant 0 : index
      %c0_13 = arith.constant 0 : index
      %13 = vector.load %arg5[%c0_12, %c0_13] : memref<8x128xf32, #tpu.memory_space<vmem>>, vector<1x128xf32>
      %14 = vector.broadcast %13 : vector<1x128xf32> to vector<128x128xf32>
      %15 = arith.addf %12, %14 : vector<128x128xf32>
      %cst_14 = arith.constant 0.000000e+00 : f32
      %16 = vector.broadcast %cst_14 : f32 to vector<128x128xf32>
      %17 = arith.maximumf %15, %16 : vector<128x128xf32>
      %c0_15 = arith.constant 0 : index
      %c0_16 = arith.constant 0 : index
      %18 = vector.load %arg6[%c0_15, %c0_16] : memref<128x128xf32, #tpu.memory_space<vmem>>, vector<128x128xf32>
      tpu.vector_store %arg6[%c0_15, %c0_16], %17 {strides = array<i32>} : memref<128x128xf32, #tpu.memory_space<vmem>>, vector<128x128xf32>,
    } else {
    }
    return
  }
  func.func @transform_0(%arg0: i32, %arg1: i32, %arg2: i32) -> (i32, i32) {
    %c0_i32 = arith.constant 0 : i32
    return %arg0, %arg2 : i32, i32
  }
  func.func @transform_1(%arg0: i32, %arg1: i32, %arg2: i32) -> (i32, i32) {
    %c0_i32 = arith.constant 0 : i32
    return %arg2, %arg1 : i32, i32
  }
  func.func @transform_2(%arg0: i32, %arg1: i32, %arg2: i32) -> (i32, i32) {
    %c0_i32 = arith.constant 0 : i32
    %c0_i32_0 = arith.constant 0 : i32
    return %c0_i32, %arg1 : i32, i32
  }
  func.func @transform_3(%arg0: i32, %arg1: i32, %arg2: i32) -> (i32, i32) {
    %c0_i32 = arith.constant 0 : i32
    return %arg0, %arg1 : i32, i32
  }
}

</mosaic_0001>

<llo_original>
// kernel: tpu_custom_call.1
$region0: #{tpu_custom_call.1}
  #allocation0 [shape = 'u32[]', space=smem, size = 0x4, offset = 0x4, fixed_abs, tag = 'smem constant byte address 0x4 - core index']
  #allocation1 [shape = 'u32[72,128]{1,0:T(1,128)}', space=vmem, size = 0x9000, scoped, tag = 'internal scratch']
  #allocation2 [shape = 'f32[128,128]{1,0:T(8,128)}', space=vmem, size = 0x10000, scoped, tag = 'scratch operand']
  %s0 = inlined_call_operand.hbm [shape: bf16[128,256], index: 0, kind: input, shape index: {}]
  %s1 = inlined_call_operand.hbm [shape: bf16[256,128], index: 1, kind: input, shape index: {}]
  %s2 = inlined_call_operand.hbm [shape: f32[8,128], index: 2, kind: input, shape index: {}]
  %s3 = inlined_call_operand.hbm [shape: f32[128,128], index: 3, kind: output, shape index: {}]
  %s4 = sld [smem:[#allocation0]]
  $region42: #{tpu_custom_call.1} parent=0
    _
  %s6 = ssub.s32 1, %s4
  %s7 = scalar_select 0, %s6, %s4
  $region1: #{tpu_custom_call.1} parent=0
    #allocation3 [shape = 'u8[65536]{0}', space=vmem, size = 0x10000, scoped, tag = 'input window, operand 0, single buffered']
    #allocation4 [shape = 's32[1]{0}', space=sflag, size = 0x4, scoped, tag = 'scoped memory for tpu_custom_call.1']
    #allocation5 [shape = 's32[1]{0}', space=sflag, size = 0x4, scoped, tag = 'scoped memory for tpu_custom_call.1']
    #allocation6 [shape = 'u8[65536]{0}', space=vmem, size = 0x10000, scoped, tag = 'input window, operand 1, single buffered']
    #allocation7 [shape = 's32[1]{0}', space=sflag, size = 0x4, scoped, tag = 'scoped memory for tpu_custom_call.1']
    #allocation8 [shape = 'u8[4096]{0}', space=vmem, size = 0x1000, scoped, tag = 'input window, operand 2, single buffered']
    #allocation9 [shape = 'u8[65536]{0}', space=vmem, size = 0x10000, scoped, tag = 'output window, operand 0, single buffered']
    %8 = vsyncpa [#allocation4], 0
    %9 = vsyncpa [#allocation7], 0
    %10 = vsyncpa [#allocation5], 0
    // Predicated region
    $region2: #{tpu_custom_call.1} parent=1 // pred_check
      _
    $region3: #{tpu_custom_call.1} parent=1 // pred_check_branch
      %12 = sbr.rel (0) target = $region5
    $region4: #{tpu_custom_call.1} parent=1 // pred_region
      %14 = vsyncadd [#allocation4], 0
      %s15 = sshll.u32 %s0, 4
      %s16 = int_to_ptr.hbm [resolvable:$true] %s15
      %s17 = sshll.u32 [#allocation3], 4
      %s18 = int_to_ptr.vmem [resolvable:$true] %s17
      %23 = dma.hbm_to_vmem [thread:$0]  %s16, 2048, %s18, [#allocation4], 128, 128, 8
    $region5: #{tpu_custom_call.1} parent=1 // pred_fallthru
      _
    // Predicated region
    $region6: #{tpu_custom_call.1} parent=1 // pred_check
      _
    $region7: #{tpu_custom_call.1} parent=1 // pred_check_branch
      %25 = sbr.rel (0) target = $region9
    $region8: #{tpu_custom_call.1} parent=1 // pred_region
      %27 = vsyncadd [#allocation7], 0
      %s28 = sshll.u32 %s1, 4
      %s29 = int_to_ptr.hbm [resolvable:$true] %s28
      %s30 = sshll.u32 [#allocation6], 4
      %s31 = int_to_ptr.vmem [resolvable:$true] %s30
      %36 = dma.hbm_to_vmem [thread:$0]  %s29, 2048, %s31, [#allocation7], 64, 64, 4
    $region9: #{tpu_custom_call.1} parent=1 // pred_fallthru
      _
    // Predicated region
    $region10: #{tpu_custom_call.1} parent=1 // pred_check
      _
    $region11: #{tpu_custom_call.1} parent=1 // pred_check_branch
      %38 = sbr.rel (0) target = $region13
    $region12: #{tpu_custom_call.1} parent=1 // pred_region
      %40 = vsyncadd [#allocation7], 0
      %s42 = sshll.u32 %s2, 4
      %s43 = int_to_ptr.hbm [resolvable:$true] %s42
      %s44 = sshll.u32 [#allocation8], 4
      %s45 = int_to_ptr.vmem [resolvable:$true] %s44
      %47 = dma.hbm_to_vmem [thread:$0]  %s43, 128, %s45, [#allocation7]
    $region13: #{tpu_custom_call.1} parent=1 // pred_fallthru
      _
    // Predicated region
    $region14: #{tpu_custom_call.1} parent=1 // pred_check
      _
    $region15: #{tpu_custom_call.1} parent=1 // pred_check_branch
      %49 = sbr.rel (0) target = $region17
    $region16: #{tpu_custom_call.1} parent=1 // pred_region
      %51 = dma.done [#allocation4], 2048
    $region17: #{tpu_custom_call.1} parent=1 // pred_fallthru
      _
    // Predicated region
    $region18: #{tpu_custom_call.1} parent=1 // pred_check
      _
    $region19: #{tpu_custom_call.1} parent=1 // pred_check_branch
      %53 = sbr.rel (0) target = $region21
    $region20: #{tpu_custom_call.1} parent=1 // pred_region
      %55 = dma.done [#allocation7], 2048
    $region21: #{tpu_custom_call.1} parent=1 // pred_fallthru
      _
    // Predicated region
    $region22: #{tpu_custom_call.1} parent=1 // pred_check
      _
    $region23: #{tpu_custom_call.1} parent=1 // pred_check_branch
      %57 = sbr.rel (0) target = $region25
    $region24: #{tpu_custom_call.1} parent=1 // pred_region
      %59 = dma.done [#allocation7], 128
    $region25: #{tpu_custom_call.1} parent=1 // pred_fallthru
      _
    %p60 = scmp.eq.s32.totalorder 0, 0
    // Predicated region
    $region26: #{tpu_custom_call.1} parent=1 // pred_check
      %p61 = pneg %p60
    $region27: #{tpu_custom_call.1} parent=1 // pred_check_branch
      %63 = sbr.rel (%p61) target = $region29
    $region28: #{tpu_custom_call.1} parent=1 // pred_region
      %64 = vst [vmem:[#allocation2] sm:$0xff] 0.0
      %65 = vst [vmem:[#allocation2 + $0x8] sm:$0xff] 0.0
      %66 = vst [vmem:[#allocation2 + $0x10] sm:$0xff] 0.0
      %67 = vst [vmem:[#allocation2 + $0x18] sm:$0xff] 0.0
      %68 = vst [vmem:[#allocation2 + $0x20] sm:$0xff] 0.0
      %69 = vst [vmem:[#allocation2 + $0x28] sm:$0xff] 0.0
      %70 = vst [vmem:[#allocation2 + $0x30] sm:$0xff] 0.0
      %71 = vst [vmem:[#allocation2 + $0x38] sm:$0xff] 0.0
      %72 = vst [vmem:[#allocation2 + $0x40] sm:$0xff] 0.0
      %73 = vst [vmem:[#allocation2 + $0x48] sm:$0xff] 0.0
      %74 = vst [vmem:[#allocation2 + $0x50] sm:$0xff] 0.0
      %75 = vst [vmem:[#allocation2 + $0x58] sm:$0xff] 0.0
      %76 = vst [vmem:[#allocation2 + $0x60] sm:$0xff] 0.0
      %77 = vst [vmem:[#allocation2 + $0x68] sm:$0xff] 0.0
      %78 = vst [vmem:[#allocation2 + $0x70] sm:$0xff] 0.0
      %79 = vst [vmem:[#allocation2 + $0x78] sm:$0xff] 0.0
    $region29: #{tpu_custom_call.1} parent=1 // pred_fallthru
      _
    %v80 = vld [vmem:[#allocation2] sm:$0xff]
    %v81 = vld [vmem:[#allocation2 + $0x8] sm:$0xff]
    %v82 = vld [vmem:[#allocation2 + $0x10] sm:$0xff]
    %v83 = vld [vmem:[#allocation2 + $0x18] sm:$0xff]
    %v84 = vld [vmem:[#allocation2 + $0x20] sm:$0xff]
    %v85 = vld [vmem:[#allocation2 + $0x28] sm:$0xff]
    %v86 = vld [vmem:[#allocation2 + $0x30] sm:$0xff]
    %v87 = vld [vmem:[#allocation2 + $0x38] sm:$0xff]
    %v88 = vld [vmem:[#allocation2 + $0x40] sm:$0xff]
    %v89 = vld [vmem:[#allocation2 + $0x48] sm:$0xff]
    %v90 = vld [vmem:[#allocation2 + $0x50] sm:$0xff]
    %v91 = vld [vmem:[#allocation2 + $0x58] sm:$0xff]
    %v92 = vld [vmem:[#allocation2 + $0x60] sm:$0xff]
    %v93 = vld [vmem:[#allocation2 + $0x68] sm:$0xff]
    %v94 = vld [vmem:[#allocation2 + $0x70] sm:$0xff]
    %v95 = vld [vmem:[#allocation2 + $0x78] sm:$0xff]
    %v96 = vld [vmem:[#allocation3] sm:$0xff]
    %v97 = vld [vmem:[#allocation3 + $0x8] sm:$0xff]
    %v98 = vld [vmem:[#allocation3 + $0x10] sm:$0xff]
    %v99 = vld [vmem:[#allocation3 + $0x18] sm:$0xff]
    %v100 = vld [vmem:[#allocation3 + $0x20] sm:$0xff]
    %v101 = vld [vmem:[#allocation3 + $0x28] sm:$0xff]
    %v102 = vld [vmem:[#allocation3 + $0x30] sm:$0xff]
    %v103 = vld [vmem:[#allocation3 + $0x38] sm:$0xff]
    %v104 = vld [vmem:[#allocation3 + $0x40] sm:$0xff]
    %v105 = vld [vmem:[#allocation3 + $0x48] sm:$0xff]
    %v106 = vld [vmem:[#allocation3 + $0x50] sm:$0xff]
    %v107 = vld [vmem:[#allocation3 + $0x58] sm:$0xff]
    %v108 = vld [vmem:[#allocation3 + $0x60] sm:$0xff]
    %v109 = vld [vmem:[#allocation3 + $0x68] sm:$0xff]
    %v110 = vld [vmem:[#allocation3 + $0x70] sm:$0xff]
    %v111 = vld [vmem:[#allocation3 + $0x78] sm:$0xff]
    %v112 = vld [vmem:[#allocation6] sm:$0xf]
    %v113 = vld [vmem:[#allocation6 + $0x4] sm:$0xf]
    %v114 = vld [vmem:[#allocation6 + $0x8] sm:$0xf]
    %v115 = vld [vmem:[#allocation6 + $0xc] sm:$0xf]
    %v116 = vld [vmem:[#allocation6 + $0x10] sm:$0xf]
    %v117 = vld [vmem:[#allocation6 + $0x14] sm:$0xf]
    %v118 = vld [vmem:[#allocation6 + $0x18] sm:$0xf]
    %v119 = vld [vmem:[#allocation6 + $0x1c] sm:$0xf]
    %v120 = vld [vmem:[#allocation6 + $0x20] sm:$0xf]
    %v121 = vld [vmem:[#allocation6 + $0x24] sm:$0xf]
    %v122 = vld [vmem:[#allocation6 + $0x28] sm:$0xf]
    %v123 = vld [vmem:[#allocation6 + $0x2c] sm:$0xf]
    %v124 = vld [vmem:[#allocation6 + $0x30] sm:$0xf]
    %v125 = vld [vmem:[#allocation6 + $0x34] sm:$0xf]
    %v126 = vld [vmem:[#allocation6 + $0x38] sm:$0xf]
    %v127 = vld [vmem:[#allocation6 + $0x3c] sm:$0xf]
    %v128 = vld [vmem:[#allocation6 + $0x40] sm:$0xf]
    %v129 = vld [vmem:[#allocation6 + $0x44] sm:$0xf]
    %v130 = vld [vmem:[#allocation6 + $0x48] sm:$0xf]
    %v131 = vld [vmem:[#allocation6 + $0x4c] sm:$0xf]
    %v132 = vld [vmem:[#allocation6 + $0x50] sm:$0xf]
    %v133 = vld [vmem:[#allocation6 + $0x54] sm:$0xf]
    %v134 = vld [vmem:[#allocation6 + $0x58] sm:$0xf]
    %v135 = vld [vmem:[#allocation6 + $0x5c] sm:$0xf]
    %v136 = vld [vmem:[#allocation6 + $0x60] sm:$0xf]
    %v137 = vld [vmem:[#allocation6 + $0x64] sm:$0xf]
    %v138 = vld [vmem:[#allocation6 + $0x68] sm:$0xf]
    %v139 = vld [vmem:[#allocation6 + $0x6c] sm:$0xf]
    %v140 = vld [vmem:[#allocation6 + $0x70] sm:$0xf]
    %v141 = vld [vmem:[#allocation6 + $0x74] sm:$0xf]
    %v142 = vld [vmem:[#allocation6 + $0x78] sm:$0xf]
    %v143 = vld [vmem:[#allocation6 + $0x7c] sm:$0xf]
    %v160 = vunpack.c.l.b16 %v96
    %v161 = vunpack.c.h.b16 %v96
    %v162 = vunpack.c.l.b16 %v97
    %v163 = vunpack.c.h.b16 %v97
    %v164 = vunpack.c.l.b16 %v98
    %v165 = vunpack.c.h.b16 %v98
    %v166 = vunpack.c.l.b16 %v99
    %v167 = vunpack.c.h.b16 %v99
    %v168 = vunpack.c.l.b16 %v100
    %v169 = vunpack.c.h.b16 %v100
    %v170 = vunpack.c.l.b16 %v101
    %v171 = vunpack.c.h.b16 %v101
    %v172 = vunpack.c.l.b16 %v102
    %v173 = vunpack.c.h.b16 %v102
    %v174 = vunpack.c.l.b16 %v103
    %v175 = vunpack.c.h.b16 %v103
    %v176 = vunpack.c.l.b16 %v104
    %v177 = vunpack.c.h.b16 %v104
    %v178 = vunpack.c.l.b16 %v105
    %v179 = vunpack.c.h.b16 %v105
    %v180 = vunpack.c.l.b16 %v106
    %v181 = vunpack.c.h.b16 %v106
    %v182 = vunpack.c.l.b16 %v107
    %v183 = vunpack.c.h.b16 %v107
    %v184 = vunpack.c.l.b16 %v108
    %v185 = vunpack.c.h.b16 %v108
    %v186 = vunpack.c.l.b16 %v109
    %v187 = vunpack.c.h.b16 %v109
    %v188 = vunpack.c.l.b16 %v110
    %v189 = vunpack.c.h.b16 %v110
    %v190 = vunpack.c.l.b16 %v111
    %v191 = vunpack.c.h.b16 %v111
    %v192 = vpack.c.b16 %v162, %v160
    %v193 = vpack.c.b16 %v163, %v161
    %v194 = vpack.c.b16 %v166, %v164
    %v195 = vpack.c.b16 %v167, %v165
    %v196 = vpack.c.b16 %v170, %v168
    %v197 = vpack.c.b16 %v171, %v169
    %v198 = vpack.c.b16 %v174, %v172
    %v199 = vpack.c.b16 %v175, %v173
    %v200 = vpack.c.b16 %v178, %v176
    %v201 = vpack.c.b16 %v179, %v177
    %v202 = vpack.c.b16 %v182, %v180
    %v203 = vpack.c.b16 %v183, %v181
    %v204 = vpack.c.b16 %v186, %v184
    %v205 = vpack.c.b16 %v187, %v185
    %v206 = vpack.c.b16 %v190, %v188
    %v207 = vpack.c.b16 %v191, %v189
    %v256 = vunpack.c.l.b16 %v112
    %v257 = vunpack.c.l.b16 %v113
    %v258 = vunpack.c.l.b16 %v114
    %v259 = vunpack.c.l.b16 %v115
    %v260 = vunpack.c.l.b16 %v116
    %v261 = vunpack.c.l.b16 %v117
    %v262 = vunpack.c.l.b16 %v118
    %v263 = vunpack.c.l.b16 %v119
    %v264 = vunpack.c.l.b16 %v120
    %v265 = vunpack.c.l.b16 %v121
    %v266 = vunpack.c.l.b16 %v122
    %v267 = vunpack.c.l.b16 %v123
    %v268 = vunpack.c.l.b16 %v124
    %v269 = vunpack.c.l.b16 %v125
    %v270 = vunpack.c.l.b16 %v126
    %v271 = vunpack.c.l.b16 %v127
    %v272 = vunpack.c.l.b16 %v128
    %v273 = vunpack.c.l.b16 %v129
    %v274 = vunpack.c.l.b16 %v130
    %v275 = vunpack.c.l.b16 %v131
    %v276 = vunpack.c.l.b16 %v132
    %v277 = vunpack.c.l.b16 %v133
    %v278 = vunpack.c.l.b16 %v134
    %v279 = vunpack.c.l.b16 %v135
    %v280 = vunpack.c.l.b16 %v136
    %v281 = vunpack.c.l.b16 %v137
    %v282 = vunpack.c.l.b16 %v138
    %v283 = vunpack.c.l.b16 %v139
    %v284 = vunpack.c.l.b16 %v140
    %v285 = vunpack.c.l.b16 %v141
    %v286 = vunpack.c.l.b16 %v142
    %v287 = vunpack.c.l.b16 %v143
    %v288 = vpack.c.b16 %v257, %v256
    %v289 = vpack.c.b16 %v259, %v258
    %v290 = vpack.c.b16 %v261, %v260
    %v291 = vpack.c.b16 %v263, %v262
    %v292 = vpack.c.b16 %v265, %v264
    %v293 = vpack.c.b16 %v267, %v266
    %v294 = vpack.c.b16 %v269, %v268
    %v295 = vpack.c.b16 %v271, %v270
    %v296 = vpack.c.b16 %v273, %v272
    %v297 = vpack.c.b16 %v275, %v274
    %v298 = vpack.c.b16 %v277, %v276
    %v299 = vpack.c.b16 %v279, %v278
    %v300 = vpack.c.b16 %v281, %v280
    %v301 = vpack.c.b16 %v283, %v282
    %v302 = vpack.c.b16 %v285, %v284
    %v303 = vpack.c.b16 %v287, %v286
    %320 = vmatpush.bf16.msra.mxu0 %v295
    %321 = vmatpush.bf16.msra.mxu0 %v294
    %322 = vmatpush.bf16.msra.mxu0 %v293
    %323 = vmatpush.bf16.msra.mxu0 %v292
    %324 = vmatpush.bf16.msra.mxu0 %v291
    %325 = vmatpush.bf16.msra.mxu0 %v290
    %326 = vmatpush.bf16.msra.mxu0 %v289
    %327 = vmatpush.bf16.msra.mxu0 %v288
    %328 = vmatmul.bf16.gmra.mxu0 %v192
    %v329 = vpop.f32.mrf.mxu0
    %v330 = vadd.f32 0.0, %v329
    %v331 = vpop.f32.mrf.mxu0
    %v332 = vadd.f32 0.0, %v331
    %333 = vmatmul.bf16.gmra.mxu0 %v194
    %v334 = vpop.f32.mrf.mxu0
    %v335 = vadd.f32 0.0, %v334
    %v336 = vpop.f32.mrf.mxu0
    %v337 = vadd.f32 0.0, %v336
    %338 = vmatmul.bf16.gmra.mxu0 %v196
    %v339 = vpop.f32.mrf.mxu0
    %v340 = vadd.f32 0.0, %v339
    %v341 = vpop.f32.mrf.mxu0
    %v342 = vadd.f32 0.0, %v341
    %343 = vmatmul.bf16.gmra.mxu0 %v198
    %v344 = vpop.f32.mrf.mxu0
    %v345 = vadd.f32 0.0, %v344
    %v346 = vpop.f32.mrf.mxu0
    %v347 = vadd.f32 0.0, %v346
    %348 = vmatmul.bf16.gmra.mxu0 %v200
    %v349 = vpop.f32.mrf.mxu0
    %v350 = vadd.f32 0.0, %v349
    %v351 = vpop.f32.mrf.mxu0
    %v352 = vadd.f32 0.0, %v351
    %353 = vmatmul.bf16.gmra.mxu0 %v202
    %v354 = vpop.f32.mrf.mxu0
    %v355 = vadd.f32 0.0, %v354
    %v356 = vpop.f32.mrf.mxu0
    %v357 = vadd.f32 0.0, %v356
    %358 = vmatmul.bf16.gmra.mxu0 %v204
    %v359 = vpop.f32.mrf.mxu0
    %v360 = vadd.f32 0.0, %v359
    %v361 = vpop.f32.mrf.mxu0
    %v362 = vadd.f32 0.0, %v361
    %363 = vmatmul.bf16.gmra.mxu0 %v206
    %v364 = vpop.f32.mrf.mxu0
    %v365 = vadd.f32 0.0, %v364
    %v366 = vpop.f32.mrf.mxu0
    %v367 = vadd.f32 0.0, %v366
    %368 = vdwg.mxu0
    %369 = vmatpush.bf16.msra.mxu0 %v303
    %370 = vmatpush.bf16.msra.mxu0 %v302
    %371 = vmatpush.bf16.msra.mxu0 %v301
    %372 = vmatpush.bf16.msra.mxu0 %v300
    %373 = vmatpush.bf16.msra.mxu0 %v299
    %374 = vmatpush.bf16.msra.mxu0 %v298
    %375 = vmatpush.bf16.msra.mxu0 %v297
    %376 = vmatpush.bf16.msra.mxu0 %v296
    %377 = vmatmul.bf16.gmra.mxu0 %v193
    %v378 = vpop.f32.mrf.mxu0
    %v379 = vadd.f32 %v330, %v378
    %v380 = vpop.f32.mrf.mxu0
    %v381 = vadd.f32 %v332, %v380
    %382 = vmatmul.bf16.gmra.mxu0 %v195
    %v383 = vpop.f32.mrf.mxu0
    %v384 = vadd.f32 %v335, %v383
    %v385 = vpop.f32.mrf.mxu0
    %v386 = vadd.f32 %v337, %v385
    %387 = vmatmul.bf16.gmra.mxu0 %v197
    %v388 = vpop.f32.mrf.mxu0
    %v389 = vadd.f32 %v340, %v388
    %v390 = vpop.f32.mrf.mxu0
    %v391 = vadd.f32 %v342, %v390
    %392 = vmatmul.bf16.gmra.mxu0 %v199
    %v393 = vpop.f32.mrf.mxu0
    %v394 = vadd.f32 %v345, %v393
    %v395 = vpop.f32.mrf.mxu0
    %v396 = vadd.f32 %v347, %v395
    %397 = vmatmul.bf16.gmra.mxu0 %v201
    %v398 = vpop.f32.mrf.mxu0
    %v399 = vadd.f32 %v350, %v398
    %v400 = vpop.f32.mrf.mxu0
    %v401 = vadd.f32 %v352, %v400
    %402 = vmatmul.bf16.gmra.mxu0 %v203
    %v403 = vpop.f32.mrf.mxu0
    %v404 = vadd.f32 %v355, %v403
    %v405 = vpop.f32.mrf.mxu0
    %v406 = vadd.f32 %v357, %v405
    %407 = vmatmul.bf16.gmra.mxu0 %v205
    %v408 = vpop.f32.mrf.mxu0
    %v409 = vadd.f32 %v360, %v408
    %v410 = vpop.f32.mrf.mxu0
    %v411 = vadd.f32 %v362, %v410
    %412 = vmatmul.bf16.gmra.mxu0 %v207
    %v413 = vpop.f32.mrf.mxu0
    %v414 = vadd.f32 %v365, %v413
    %v415 = vpop.f32.mrf.mxu0
    %v416 = vadd.f32 %v367, %v415
    %417 = vdwg.mxu0
    %v418 = vadd.f32 %v80, %v379
    %v419 = vadd.f32 %v81, %v381
    %v420 = vadd.f32 %v82, %v384
    %v421 = vadd.f32 %v83, %v386
    %v422 = vadd.f32 %v84, %v389
    %v423 = vadd.f32 %v85, %v391
    %v424 = vadd.f32 %v86, %v394
    %v425 = vadd.f32 %v87, %v396
    %v426 = vadd.f32 %v88, %v399
    %v427 = vadd.f32 %v89, %v401
    %v428 = vadd.f32 %v90, %v404
    %v429 = vadd.f32 %v91, %v406
    %v430 = vadd.f32 %v92, %v409
    %v431 = vadd.f32 %v93, %v411
    %v432 = vadd.f32 %v94, %v414
    %v433 = vadd.f32 %v95, %v416
    %434 = vst [vmem:[#allocation2] sm:$0xff] %v418
    %435 = vst [vmem:[#allocation2 + $0x8] sm:$0xff] %v419
    %436 = vst [vmem:[#allocation2 + $0x10] sm:$0xff] %v420
    %437 = vst [vmem:[#allocation2 + $0x18] sm:$0xff] %v421
    %438 = vst [vmem:[#allocation2 + $0x20] sm:$0xff] %v422
    %439 = vst [vmem:[#allocation2 + $0x28] sm:$0xff] %v423
    %440 = vst [vmem:[#allocation2 + $0x30] sm:$0xff] %v424
    %441 = vst [vmem:[#allocation2 + $0x38] sm:$0xff] %v425
    %442 = vst [vmem:[#allocation2 + $0x40] sm:$0xff] %v426
    %443 = vst [vmem:[#allocation2 + $0x48] sm:$0xff] %v427
    %444 = vst [vmem:[#allocation2 + $0x50] sm:$0xff] %v428
    %445 = vst [vmem:[#allocation2 + $0x58] sm:$0xff] %v429
    %446 = vst [vmem:[#allocation2 + $0x60] sm:$0xff] %v430
    %447 = vst [vmem:[#allocation2 + $0x68] sm:$0xff] %v431
    %448 = vst [vmem:[#allocation2 + $0x70] sm:$0xff] %v432
    %449 = vst [vmem:[#allocation2 + $0x78] sm:$0xff] %v433
    // Predicated region
    $region30: #{tpu_custom_call.1} parent=1 // pred_check
      %p450 = pneg %p60
    $region31: #{tpu_custom_call.1} parent=1 // pred_check_branch
      %452 = sbr.rel (%p450) target = $region33
    $region32: #{tpu_custom_call.1} parent=1 // pred_region
      %v453 = vld [vmem:[#allocation2] sm:$0xff]
      %v454 = vld [vmem:[#allocation2 + $0x8] sm:$0xff]
      %v455 = vld [vmem:[#allocation2 + $0x10] sm:$0xff]
      %v456 = vld [vmem:[#allocation2 + $0x18] sm:$0xff]
      %v457 = vld [vmem:[#allocation2 + $0x20] sm:$0xff]
      %v458 = vld [vmem:[#allocation2 + $0x28] sm:$0xff]
      %v459 = vld [vmem:[#allocation2 + $0x30] sm:$0xff]
      %v460 = vld [vmem:[#allocation2 + $0x38] sm:$0xff]
      %v461 = vld [vmem:[#allocation2 + $0x40] sm:$0xff]
      %v462 = vld [vmem:[#allocation2 + $0x48] sm:$0xff]
      %v463 = vld [vmem:[#allocation2 + $0x50] sm:$0xff]
      %v464 = vld [vmem:[#allocation2 + $0x58] sm:$0xff]
      %v465 = vld [vmem:[#allocation2 + $0x60] sm:$0xff]
      %v466 = vld [vmem:[#allocation2 + $0x68] sm:$0xff]
      %v467 = vld [vmem:[#allocation2 + $0x70] sm:$0xff]
      %v468 = vld [vmem:[#allocation2 + $0x78] sm:$0xff]
      %v469 = vld [vmem:[#allocation8] sm:$0x1]
      %v470 = vperm.slane %v469, 0
      %v471 = vadd.f32 %v453, %v470
      %v472 = vadd.f32 %v454, %v470
      %v473 = vadd.f32 %v455, %v470
      %v474 = vadd.f32 %v456, %v470
      %v475 = vadd.f32 %v457, %v470
      %v476 = vadd.f32 %v458, %v470
      %v477 = vadd.f32 %v459, %v470
      %v478 = vadd.f32 %v460, %v470
      %v479 = vadd.f32 %v461, %v470
      %v480 = vadd.f32 %v462, %v470
      %v481 = vadd.f32 %v463, %v470
      %v482 = vadd.f32 %v464, %v470
      %v483 = vadd.f32 %v465, %v470
      %v484 = vadd.f32 %v466, %v470
      %v485 = vadd.f32 %v467, %v470
      %v486 = vadd.f32 %v468, %v470
      %v487 = vmax.f32 %v471, 0.0
      %v488 = vmax.f32 %v472, 0.0
      %v489 = vmax.f32 %v473, 0.0
      %v490 = vmax.f32 %v474, 0.0
      %v491 = vmax.f32 %v475, 0.0
      %v492 = vmax.f32 %v476, 0.0
      %v493 = vmax.f32 %v477, 0.0
      %v494 = vmax.f32 %v478, 0.0
      %v495 = vmax.f32 %v479, 0.0
      %v496 = vmax.f32 %v480, 0.0
      %v497 = vmax.f32 %v481, 0.0
      %v498 = vmax.f32 %v482, 0.0
      %v499 = vmax.f32 %v483, 0.0
      %v500 = vmax.f32 %v484, 0.0
      %v501 = vmax.f32 %v485, 0.0
      %v502 = vmax.f32 %v486, 0.0
      %503 = vst [vmem:[#allocation9] sm:$0xff] %v487
      %504 = vst [vmem:[#allocation9 + $0x8] sm:$0xff] %v488
      %505 = vst [vmem:[#allocation9 + $0x10] sm:$0xff] %v489
      %506 = vst [vmem:[#allocation9 + $0x18] sm:$0xff] %v490
      %507 = vst [vmem:[#allocation9 + $0x20] sm:$0xff] %v491
      %508 = vst [vmem:[#allocation9 + $0x28] sm:$0xff] %v492
      %509 = vst [vmem:[#allocation9 + $0x30] sm:$0xff] %v493
      %510 = vst [vmem:[#allocation9 + $0x38] sm:$0xff] %v494
      %511 = vst [vmem:[#allocation9 + $0x40] sm:$0xff] %v495
      %512 = vst [vmem:[#allocation9 + $0x48] sm:$0xff] %v496
      %513 = vst [vmem:[#allocation9 + $0x50] sm:$0xff] %v497
      %514 = vst [vmem:[#allocation9 + $0x58] sm:$0xff] %v498
      %515 = vst [vmem:[#allocation9 + $0x60] sm:$0xff] %v499
      %516 = vst [vmem:[#allocation9 + $0x68] sm:$0xff] %v500
      %517 = vst [vmem:[#allocation9 + $0x70] sm:$0xff] %v501
      %518 = vst [vmem:[#allocation9 + $0x78] sm:$0xff] %v502
    $region33: #{tpu_custom_call.1} parent=1 // pred_fallthru
      _
    // Predicated region
    $region34: #{tpu_custom_call.1} parent=1 // pred_check
      _
    $region35: #{tpu_custom_call.1} parent=1 // pred_check_branch
      %520 = sbr.rel (0) target = $region37
    $region36: #{tpu_custom_call.1} parent=1 // pred_region
      %522 = vsyncadd [#allocation5], 0
      %s523 = sshll.u32 [#allocation9], 4
      %s524 = int_to_ptr.vmem [resolvable:$true] %s523
      %s525 = sshll.u32 %s3, 4
      %s526 = int_to_ptr.hbm [resolvable:$true] %s525
      %531 = dma.vmem_to_hbm [thread:$0]  %s524, 2048, %s526, [#allocation5], 128, 128, 8
    $region37: #{tpu_custom_call.1} parent=1 // pred_fallthru
      _
    // Predicated region
    $region38: #{tpu_custom_call.1} parent=1 // pred_check
      _
    $region39: #{tpu_custom_call.1} parent=1 // pred_check_branch
      %533 = sbr.rel (0) target = $region41
    $region40: #{tpu_custom_call.1} parent=1 // pred_region
      %535 = dma.done [#allocation5], 2048
    $region41: #{tpu_custom_call.1} parent=1 // pred_fallthru
      _
    %536 = vsyncpa [#allocation4], 1
    %537 = vsyncpa [#allocation7], 1
    %538 = vsyncpa [#allocation5], 1

</llo_original>
